<compile_context>
chip_gen: v5e
topology: v5e:2x2
jax: 0.10.0
libtpu: 0.0.40
codegen_flags: <defaults>
</compile_context>

<pallas_src>
import jax
import jax.numpy as jnp
from jax import lax
from jax.experimental import pallas as pl
from jax.experimental.pallas import tpu as pltpu


def _interp_matrix(out_size: int, in_size: int, dtype=jnp.float32):
    """1-D bilinear (align_corners=True) resampling matrix, shape (out_size, in_size)."""
    if out_size == 1:
        pos = jnp.zeros((1,), dtype=jnp.float32)
    else:
        pos = jnp.arange(out_size, dtype=jnp.float32) * (
            (in_size - 1) / (out_size - 1)
        )
    i0 = jnp.clip(jnp.floor(pos).astype(jnp.int32), 0, in_size - 1)
    i1 = jnp.clip(i0 + 1, 0, in_size - 1)
    frac = pos - i0.astype(jnp.float32)
    eye = jnp.eye(in_size, dtype=jnp.float32)
    M = (1.0 - frac)[:, None] * eye[i0] + frac[:, None] * eye[i1]
    return M.astype(dtype)


def _make_kernel(num_skips, skip_channels, C, H, Ht, compute_dtype):
    def kernel(x_ref, awt_ref, ah_ref, *refs):
        # x_ref:   (C*H, W)       one batch element, rows = (channel, height)
        # awt_ref: (W, TW)        width-resample matrix (lane tile of Wt)
        # ah_ref:  (Ht, H)        height-resample matrix (constant block)
        # refs[:num_skips]: (Ci, Ht, TW) skip blocks
        # refs[num_skips]:  (C_total, Ht, TW) output block
        skip_refs = refs[:num_skips]
        out_ref = refs[num_skips]
        tw = out_ref.shape[-1]

        # ---- Fused concat: copy each skip straight to its final channel offset.
        # (On v5e these pure-memcpy channels could instead go through a
        #  VMEM->VMEM DMA to free the single vst slot.)
        off = 0
        for sref, ci in zip(skip_refs, skip_channels):
            out_ref[off:off + ci] = sref[...].astype(out_ref.dtype)
            off += ci

        # ---- Stage 1: width resample. Single lane-dense GEMM, M = C*H, K = W.
        y1 = jnp.dot(x_ref[...], awt_ref[...], preferred_element_type=jnp.float32)
        y1 = y1.reshape(C, H, tw).astype(compute_dtype)          # (C, H, TW)

        # ---- Stage 2: height resample. Batched-over-channels K = H contraction.
        ah_b = jnp.broadcast_to(ah_ref[...][None], (C, Ht, H))   # (C, Ht, H)
        y2 = lax.dot_general(
            ah_b, y1,
            dimension_numbers=(((2,), (1,)), ((0,), (0,))),
            preferred_element_type=jnp.float32)                  # (C, Ht, TW)

        out_ref[off:off + C] = y2.astype(out_ref.dtype)

    return kernel


def up_concat(x, concat_with):
    """Forward pass of Up_concat.

    x:           (N, C, H, W)
    concat_with: list of (N, Ci, Ht, Wt) arrays (all same spatial size).
    Returns concat([*concat_with, interp(x)], axis=1), NCHW layout like PyTorch.
    """
    N, C, H, W = x.shape
    Ht, Wt = int(concat_with[0].shape[2]), int(concat_with[0].shape[3])
    skip_channels = tuple(int(s.shape[1]) for s in concat_with)
    C_total = sum(skip_channels) + C

    out_dtype = jnp.result_type(x.dtype, *[s.dtype for s in concat_with])
    compute_dtype = x.dtype

    # Compose upsample(x2) and resize-to-target into single per-axis matrices
    # (both resamples are linear, align_corners=True).
    Ah = (_interp_matrix(Ht, 2 * H) @ _interp_matrix(2 * H, H)).astype(compute_dtype)      # (Ht, H)
    AwT = (_interp_matrix(Wt, 2 * W) @ _interp_matrix(2 * W, W)).T.astype(compute_dtype)   # (W, Wt)

    x_flat = x.reshape(N, C * H, W)   # contiguous reshape in the wrapper (free)

    # ---- Per-generation VMEM budgeting and lane-tile (Wt) selection ----------
    try:
        vmem_cap = int(pltpu.get_tpu_info().vmem_capacity_bytes)
    except Exception:
        vmem_cap = 0
    if not vmem_cap:
        vmem_cap = 64 << 20          # conservative fallback: v7x physical VMEM

    it_in = jnp.dtype(compute_dtype).itemsize
    it_out = jnp.dtype(out_dtype).itemsize
    skip_row_bytes = sum(ci * Ht * jnp.dtype(s.dtype).itemsize
                         for ci, s in zip(skip_channels, concat_with))

    def footprint(tw):
        # Double-buffered pipelined blocks + (single) f32 compute intermediates.
        blocks = 2 * (C * H * W * it_in            # x block
                      + W * tw * it_in             # AwT block
                      + Ht * H * it_in             # Ah block
                      + skip_row_bytes * tw        # skip blocks
                      + C_total * Ht * tw * it_out)  # output block
        temps = 4 * (C * H * tw + C * Ht * H + C * Ht * tw)
        return blocks + temps

    budget = int(0.45 * vmem_cap)
    tw_cap = 1024 if vmem_cap >= (96 << 20) else 512   # 512-1024 on v5e/v6e, <=512 on v7x
    if Wt <= 128 or footprint(Wt) <= budget:
        TW = Wt
    else:
        TW = max(128, (min(Wt, tw_cap) // 128) * 128)
        while TW > 128 and footprint(TW) > budget:
            TW -= 128
    n_wt = pl.cdiv(Wt, TW)

    vmem_limit = int(min(0.85 * vmem_cap,
                         max(32 << 20, 1.3 * footprint(TW) + (4 << 20))))

    kernel = _make_kernel(len(concat_with), skip_channels, C, H, Ht, compute_dtype)

    # Separable FLOP count (stage 1 + stage 2); advisory only.
    flops = 2 * N * C * H * Wt * W + 2 * N * C * Ht * Wt * H
    bytes_accessed = int(
        x_flat.size * x_flat.dtype.itemsize
        + AwT.size * AwT.dtype.itemsize
        + Ah.size * Ah.dtype.itemsize
        + sum(s.size * s.dtype.itemsize for s in concat_with)
        + N * C_total * Ht * Wt * it_out)
    cost = pl.CostEstimate(flops=int(flops), transcendentals=0,
                           bytes_accessed=bytes_accessed)

    in_specs = [
        # x stays resident across the inner lane-tile loop (index depends only on n).
        pl.BlockSpec((None, C * H, W), lambda n, w: (n, 0, 0)),
        pl.BlockSpec((W, TW), lambda n, w: (0, w)),
        pl.BlockSpec((Ht, H), lambda n, w: (0, 0)),
    ] + [
        pl.BlockSpec((None, ci, Ht, TW), lambda n, w: (n, 0, 0, w))
        for ci in skip_channels
    ]

    out = pl.pallas_call(
        kernel,
        out_shape=jax.ShapeDtypeStruct((N, C_total, Ht, Wt), out_dtype),
        grid_spec=pltpu.PrefetchScalarGridSpec(
            num_scalar_prefetch=0,
            grid=(N, n_wt),
            in_specs=in_specs,
            out_specs=pl.BlockSpec((None, C_total, Ht, TW),
                                   lambda n, w: (n, 0, 0, w)),
        ),
        compiler_params=pltpu.CompilerParams(
            dimension_semantics=("parallel", "parallel"),
            vmem_limit_bytes=vmem_limit,
        ),
        cost_estimate=cost,
    )(x_flat, AwT, Ah, *concat_with)

    return out


if __name__ == "__main__":
    key = jax.random.PRNGKey(0)
    k1, k2, k3 = jax.random.split(key, 3)

    # Config 1: input 8x8 spatial, two skips at 12x20 spatial.
    x = jax.random.normal(k1, (2, 4, 8, 8), dtype=jnp.float32)
    skip_a = jax.random.normal(k2, (2, 6, 12, 20), dtype=jnp.float32)
    skip_b = jax.random.normal(k3, (2, 3, 12, 20), dtype=jnp.float32)

    out = jax.block_until_ready(up_concat(x, [skip_a, skip_b]))
    assert out.shape == (2, 13, 12, 20), out.shape

    Ah = _interp_matrix(12, 16) @ _interp_matrix(16, 8)
    Aw = _interp_matrix(20, 16) @ _interp_matrix(16, 8)
    ref = jnp.einsum("hH,ncHW,wW->nchw", Ah, x, Aw)
    assert jnp.allclose(out[:, :6], skip_a)
    assert jnp.allclose(out[:, 6:9], skip_b)
    assert jnp.allclose(out[:, 9:], ref, atol=1e-4, rtol=1e-4)

    # Config 2: input 16x16 spatial, one skip at 32x48 spatial.
    k4, k5 = jax.random.split(k3)
    x2 = jax.random.normal(k4, (2, 3, 16, 16), dtype=jnp.float32)
    skip_c = jax.random.normal(k5, (2, 5, 32, 48), dtype=jnp.float32)
    out2 = jax.block_until_ready(up_concat(x2, [skip_c]))
    assert out2.shape == (2, 8, 32, 48), out2.shape

    Ah2 = _interp_matrix(32, 32) @ _interp_matrix(32, 16)
    Aw2 = _interp_matrix(48, 32) @ _interp_matrix(32, 16)
    ref2 = jnp.einsum("hH,ncHW,wW->nchw", Ah2, x2, Aw2)
    assert jnp.allclose(out2[:, :5], skip_c)
    assert jnp.allclose(out2[:, 5:], ref2, atol=1e-4, rtol=1e-4)

    print("KERNEL_OK")
</pallas_src>

<mosaic_0001>
module attributes {stable_mosaic.version = 11 : i64} {
  func.func @kernel(%arg0: i32, %arg1: i32, %arg2: memref<1x32x8xf32, #tpu.memory_space<vmem>>, %arg3: memref<8x20xf32, #tpu.memory_space<vmem>>, %arg4: memref<12x8xf32, #tpu.memory_space<vmem>>, %arg5: memref<1x6x12x20xf32, #tpu.memory_space<vmem>>, %arg6: memref<1x3x12x20xf32, #tpu.memory_space<vmem>>, %arg7: memref<1x13x12x20xf32, #tpu.memory_space<vmem>>) attributes {dimension_semantics = [#tpu.dimension_semantics<parallel>, #tpu.dimension_semantics<parallel>], iteration_bounds = array<i64: 2, 1>, scalar_prefetch = 0 : i64, scratch_operands = 0 : i64, tpu.core_type = #tpu.core_type<tc>, window_params = [{transform_indices = @transform_0, window_bounds = array<i64: 1, 32, 8>}, {transform_indices = @transform_1, window_bounds = array<i64: 8, 20>}, {pipeline_mode = #tpu.pipeline_mode<synchronous>, transform_indices = @transform_2, window_bounds = array<i64: 12, 8>}, {transform_indices = @transform_3, window_bounds = array<i64: 1, 6, 12, 20>}, {transform_indices = @transform_4, window_bounds = array<i64: 1, 3, 12, 20>}, {transform_indices = @transform_5, window_bounds = array<i64: 1, 13, 12, 20>}]} {
    %c0 = arith.constant 0 : index
    %c0_0 = arith.constant 0 : index
    %c0_1 = arith.constant 0 : index
    %c0_2 = arith.constant 0 : index
    %0 = vector.load %arg5[%c0, %c0_0, %c0_1, %c0_2] : memref<1x6x12x20xf32, #tpu.memory_space<vmem>>, vector<1x6x12x20xf32>
    %1 = vector.shape_cast %0 : vector<1x6x12x20xf32> to vector<6x12x20xf32>
    %c0_3 = arith.constant 0 : index
    %c0_4 = arith.constant 0 : index
    %c0_5 = arith.constant 0 : index
    %c0_6 = arith.constant 0 : index
    %2 = vector.load %arg7[%c0_3, %c0_4, %c0_5, %c0_6] : memref<1x13x12x20xf32, #tpu.memory_space<vmem>>, vector<1x6x12x20xf32>
    %3 = vector.shape_cast %2 : vector<1x6x12x20xf32> to vector<6x12x20xf32>
    %4 = vector.shape_cast %1 : vector<6x12x20xf32> to vector<1x6x12x20xf32>
    tpu.vector_store %arg7[%c0_3, %c0_4, %c0_5, %c0_6], %4 {strides = array<i32>} : memref<1x13x12x20xf32, #tpu.memory_space<vmem>>, vector<1x6x12x20xf32>,
    %c0_7 = arith.constant 0 : index
    %c0_8 = arith.constant 0 : index
    %c0_9 = arith.constant 0 : index
    %c0_10 = arith.constant 0 : index
    %5 = vector.load %arg6[%c0_7, %c0_8, %c0_9, %c0_10] : memref<1x3x12x20xf32, #tpu.memory_space<vmem>>, vector<1x3x12x20xf32>
    %6 = vector.shape_cast %5 : vector<1x3x12x20xf32> to vector<3x12x20xf32>
    %c0_11 = arith.constant 0 : index
    %c6 = arith.constant 6 : index
    %c0_12 = arith.constant 0 : index
    %c0_13 = arith.constant 0 : index
    %7 = vector.load %arg7[%c0_11, %c6, %c0_12, %c0_13] : memref<1x13x12x20xf32, #tpu.memory_space<vmem>>, vector<1x3x12x20xf32>
    %8 = vector.shape_cast %7 : vector<1x3x12x20xf32> to vector<3x12x20xf32>
    %9 = vector.shape_cast %6 : vector<3x12x20xf32> to vector<1x3x12x20xf32>
    tpu.vector_store %arg7[%c0_11, %c6, %c0_12, %c0_13], %9 {strides = array<i32>} : memref<1x13x12x20xf32, #tpu.memory_space<vmem>>, vector<1x3x12x20xf32>,
    %c0_14 = arith.constant 0 : index
    %c0_15 = arith.constant 0 : index
    %c0_16 = arith.constant 0 : index
    %10 = vector.load %arg2[%c0_14, %c0_15, %c0_16] : memref<1x32x8xf32, #tpu.memory_space<vmem>>, vector<1x32x8xf32>
    %11 = vector.shape_cast %10 : vector<1x32x8xf32> to vector<32x8xf32>
    %c0_17 = arith.constant 0 : index
    %c0_18 = arith.constant 0 : index
    %12 = vector.load %arg3[%c0_17, %c0_18] : memref<8x20xf32, #tpu.memory_space<vmem>>, vector<8x20xf32>
    %cst = arith.constant dense<0.000000e+00> : vector<32x20xf32>
    %13 = tpu.matmul %11, %12, %cst {dimension_numbers = #tpu.dot_dimension_numbers<[1], [0], [0], [1], [0, 0, 1, 1], [], []>} : vector<32x8xf32>, vector<8x20xf32>, vector<32x20xf32> -> vector<32x20xf32>
    %14 = vector.shape_cast %13 : vector<32x20xf32> to vector<4x8x20xf32>
    %c0_19 = arith.constant 0 : index
    %c0_20 = arith.constant 0 : index
    %15 = vector.load %arg4[%c0_19, %c0_20] : memref<12x8xf32, #tpu.memory_space<vmem>>, vector<12x8xf32>
    %16 = vector.shape_cast %15 : vector<12x8xf32> to vector<1x12x8xf32>
    %17 = vector.shape_cast %16 : vector<1x12x8xf32> to vector<1x12x8xf32>
    %18 = vector.broadcast %17 : vector<1x12x8xf32> to vector<4x12x8xf32>
    %cst_21 = arith.constant dense<0.000000e+00> : vector<4x12x20xf32>
    %19 = tpu.matmul %18, %14, %cst_21 {dimension_numbers = #tpu.dot_dimension_numbers<[2], [1], [1], [2], [0, 0, 0, 1, 1, 2], [0], [0]>} : vector<4x12x8xf32>, vector<4x8x20xf32>, vector<4x12x20xf32> -> vector<4x12x20xf32>
    %c0_22 = arith.constant 0 : index
    %c9 = arith.constant 9 : index
    %c0_23 = arith.constant 0 : index
    %c0_24 = arith.constant 0 : index
    %20 = vector.load %arg7[%c0_22, %c9, %c0_23, %c0_24] : memref<1x13x12x20xf32, #tpu.memory_space<vmem>>, vector<1x4x12x20xf32>
    %21 = vector.shape_cast %20 : vector<1x4x12x20xf32> to vector<4x12x20xf32>
    %22 = vector.shape_cast %19 : vector<4x12x20xf32> to vector<1x4x12x20xf32>
    tpu.vector_store %arg7[%c0_22, %c9, %c0_23, %c0_24], %22 {strides = array<i32>} : memref<1x13x12x20xf32, #tpu.memory_space<vmem>>, vector<1x4x12x20xf32>,
    return
  }
  func.func @transform_0(%arg0: i32, %arg1: i32) -> (i32, i32, i32) {
    %c0_i32 = arith.constant 0 : i32
    %c0_i32_0 = arith.constant 0 : i32
    %c0_i32_1 = arith.constant 0 : i32
    return %arg0, %c0_i32, %c0_i32_0 : i32, i32, i32
  }
  func.func @transform_1(%arg0: i32, %arg1: i32) -> (i32, i32) {
    %c0_i32 = arith.constant 0 : i32
    %c0_i32_0 = arith.constant 0 : i32
    return %c0_i32, %arg1 : i32, i32
  }
  func.func @transform_2(%arg0: i32, %arg1: i32) -> (i32, i32) {
    %c0_i32 = arith.constant 0 : i32
    %c0_i32_0 = arith.constant 0 : i32
    %c0_i32_1 = arith.constant 0 : i32
    return %c0_i32, %c0_i32_0 : i32, i32
  }
  func.func @transform_3(%arg0: i32, %arg1: i32) -> (i32, i32, i32, i32) {
    %c0_i32 = arith.constant 0 : i32
    %c0_i32_0 = arith.constant 0 : i32
    %c0_i32_1 = arith.constant 0 : i32
    return %arg0, %c0_i32, %c0_i32_0, %arg1 : i32, i32, i32, i32
  }
  func.func @transform_4(%arg0: i32, %arg1: i32) -> (i32, i32, i32, i32) {
    %c0_i32 = arith.constant 0 : i32
    %c0_i32_0 = arith.constant 0 : i32
    %c0_i32_1 = arith.constant 0 : i32
    return %arg0, %c0_i32, %c0_i32_0, %arg1 : i32, i32, i32, i32
  }
  func.func @transform_5(%arg0: i32, %arg1: i32) -> (i32, i32, i32, i32) {
    %c0_i32 = arith.constant 0 : i32
    %c0_i32_0 = arith.constant 0 : i32
    %c0_i32_1 = arith.constant 0 : i32
    return %arg0, %c0_i32, %c0_i32_0, %arg1 : i32, i32, i32, i32
  }
}

</mosaic_0001>

<llo_original>
// kernel: tpu_custom_call.1
$region0: #{tpu_custom_call.1}
  #allocation0 [shape = 'u32[]', space=smem, size = 0x4, offset = 0x4, fixed_abs, tag = 'smem constant byte address 0x4 - core index']
  #allocation1 [shape = 'u32[72,128]{1,0:T(1,128)}', space=vmem, size = 0x9000, scoped, tag = 'internal scratch']
  %s0 = inlined_call_operand.vmem [shape: f32[2,32,8], index: 0, kind: input, shape index: {}]
  %s1 = inlined_call_operand.vmem [shape: f32[8,20], index: 1, kind: input, shape index: {}]
  %s2 = inlined_call_operand.vmem [shape: f32[12,8], index: 2, kind: input, shape index: {}]
  %s3 = inlined_call_operand.vmem [shape: f32[2,6,12,20], index: 3, kind: input, shape index: {}]
  %s4 = inlined_call_operand.vmem [shape: f32[2,3,12,20], index: 4, kind: input, shape index: {}]
  %s5 = inlined_call_operand.vmem [shape: f32[2,13,12,20], index: 5, kind: output, shape index: {}]
  %s6 = sld [smem:[#allocation0]]
  $region53: #{tpu_custom_call.1} parent=0
    _
  %s8 = ssub.s32 1, %s6
  %s9 = scalar_select 0, %s8, %s6
  loop: start=0, step=1, limit=4
  $region2: #{tpu_custom_call.1} parent=0 // loop_pre_header
    _
  $region3: #{tpu_custom_call.1} parent=0 // loop_header
    %s11 = sphi 0, %s15
    %p12 = scmp.ge.s32.totalorder %s11, 4
    %s18 = sphi 0, %s30
    %s19 = sphi 0, %s26
    %s20 = sphi 0, %s18
    %s21 = sphi 0, %s19
    %s22 = sphi 0, %s20
    %s23 = sphi 0, %s21
    %s33 = sphi 0, %s35
    %s36 = sphi 0, %s33
    %s37 = sphi 0, %s36
    %s53 = sphi 0, %s37
    %s59 = sphi 0, %s61
    %s62 = sphi 0, %s59
    %s63 = sphi 0, %s62
    %s79 = sphi 0, %s63
    %s83 = sphi 0, %s83
    %s85 = sphi 0, %s83
    %s86 = sphi 0, %s85
    %s100 = sphi 0, %s86
    %s108 = sphi 0, %s110
    %s111 = sphi 0, %s108
    %s112 = sphi 0, %s111
    %s128 = sphi 0, %s112
    %s136 = sphi 0, %s138
    %s139 = sphi 0, %s136
    %s140 = sphi 0, %s139
    %s156 = sphi 0, %s140
    %s164 = sphi 0, %s166
    %s167 = sphi 0, %s164
    %s168 = sphi 0, %s167
    %s184 = sphi 0, %s168
  $region4: #{tpu_custom_call.1} parent=0 // loop_header_branch
    %14 = sbr.rel (%p12) target = $region8
  $region5: #{tpu_custom_call.1} parent=0 // loop_body
    %s16 = ssub.s32 %s11, 1
    %s17 = ssub.s32 %s11, 2
    %s24 = sadd.s32 1, %s19
    %p25 = scmp.ge.s32.totalorder %s24, 1
    %s26 = scalar_select %p25, 0, %s24
    %s27 = sadd.s32 1, %s18
    %s28 = scalar_select %p25, %s27, %s18
    %p29 = scmp.ge.s32.totalorder %s28, 2
    %s30 = scalar_select %p29, 0, %s28
    %s31 = ssub.s32 %s18, %s30
    %p32 = scmp.eq.s32.totalorder %s31, 0
    %s34 = sadd.s32 %s33, 1
    %s35 = scalar_select %p32, %s33, %s34
    %p38 = pneg %p32
    %p39 = scmp.eq.s32.totalorder %s11, 1
    %p40 = por %p38, %p39
    %p41 = scmp.ne.s32.totalorder %s33, %s36
    %p42 = scmp.eq.s32.totalorder %s11, 0
    %p43 = por %p41, %p42
    %p44 = scmp.ne.s32.totalorder %s33, %s36
    %p45 = scmp.eq.s32.totalorder %s16, 1
    %p46 = por %p44, %p45
    %p47 = scmp.ne.s32.totalorder %s36, %s37
    %p48 = scmp.eq.s32.totalorder %s16, 0
    %p49 = por %p47, %p48
    %p50 = scmp.ne.s32.totalorder %s36, %s37
    %p51 = scmp.eq.s32.totalorder %s17, 1
    %p52 = por %p50, %p51
    %p54 = scmp.ne.s32.totalorder %s37, %s53
    %p55 = scmp.eq.s32.totalorder %s17, 0
    %p56 = por %p54, %p55
    %s57 = ssub.s32 %s19, %s26
    %p58 = scmp.eq.s32.totalorder %s57, 0
    %s60 = sadd.s32 %s59, 1
    %s61 = scalar_select %p58, %s59, %s60
    %p64 = pneg %p58
    %p65 = scmp.eq.s32.totalorder %s11, 1
    %p66 = por %p64, %p65
    %p67 = scmp.ne.s32.totalorder %s59, %s62
    %p68 = scmp.eq.s32.totalorder %s11, 0
    %p69 = por %p67, %p68
    %p70 = scmp.ne.s32.totalorder %s59, %s62
    %p71 = scmp.eq.s32.totalorder %s16, 1
    %p72 = por %p70, %p71
    %p73 = scmp.ne.s32.totalorder %s62, %s63
    %p74 = scmp.eq.s32.totalorder %s16, 0
    %p75 = por %p73, %p74
    %p76 = scmp.ne.s32.totalorder %s62, %s63
    %p77 = scmp.eq.s32.totalorder %s17, 1
    %p78 = por %p76, %p77
    %p80 = scmp.ne.s32.totalorder %s63, %s79
    %p81 = scmp.eq.s32.totalorder %s17, 0
    %p82 = por %p80, %p81
    %s84 = sadd.s32 %s83, 1
    %p87 = scmp.eq.s32.totalorder %s11, 1
    %p88 = scmp.ne.s32.totalorder %s83, %s85
    %p89 = scmp.eq.s32.totalorder %s11, 0
    %p90 = por %p88, %p89
    %p91 = scmp.ne.s32.totalorder %s83, %s85
    %p92 = scmp.eq.s32.totalorder %s16, 1
    %p93 = por %p91, %p92
    %p94 = scmp.ne.s32.totalorder %s85, %s86
    %p95 = scmp.eq.s32.totalorder %s16, 0
    %p96 = por %p94, %p95
    %p97 = scmp.ne.s32.totalorder %s85, %s86
    %p98 = scmp.eq.s32.totalorder %s17, 1
    %p99 = por %p97, %p98
    %p101 = scmp.ne.s32.totalorder %s86, %s100
    %p102 = scmp.eq.s32.totalorder %s17, 0
    %p103 = por %p101, %p102
    %s104 = ssub.s32 %s18, %s30
    %s105 = ssub.s32 %s19, %s26
    %s106 = sor.u32 %s104, %s105
    %p107 = scmp.eq.s32.totalorder %s106, 0
    %s109 = sadd.s32 %s108, 1
    %s110 = scalar_select %p107, %s108, %s109
    %p113 = pneg %p107
    %p114 = scmp.eq.s32.totalorder %s11, 1
    %p115 = por %p113, %p114
    %p116 = scmp.ne.s32.totalorder %s108, %s111
    %p117 = scmp.eq.s32.totalorder %s11, 0
    %p118 = por %p116, %p117
    %p119 = scmp.ne.s32.totalorder %s108, %s111
    %p120 = scmp.eq.s32.totalorder %s16, 1
    %p121 = por %p119, %p120
    %p122 = scmp.ne.s32.totalorder %s111, %s112
    %p123 = scmp.eq.s32.totalorder %s16, 0
    %p124 = por %p122, %p123
    %p125 = scmp.ne.s32.totalorder %s111, %s112
    %p126 = scmp.eq.s32.totalorder %s17, 1
    %p127 = por %p125, %p126
    %p129 = scmp.ne.s32.totalorder %s112, %s128
    %p130 = scmp.eq.s32.totalorder %s17, 0
    %p131 = por %p129, %p130
    %s132 = ssub.s32 %s18, %s30
    %s133 = ssub.s32 %s19, %s26
    %s134 = sor.u32 %s132, %s133
    %p135 = scmp.eq.s32.totalorder %s134, 0
    %s137 = sadd.s32 %s136, 1
    %s138 = scalar_select %p135, %s136, %s137
    %p141 = pneg %p135
    %p142 = scmp.eq.s32.totalorder %s11, 1
    %p143 = por %p141, %p142
    %p144 = scmp.ne.s32.totalorder %s136, %s139
    %p145 = scmp.eq.s32.totalorder %s11, 0
    %p146 = por %p144, %p145
    %p147 = scmp.ne.s32.totalorder %s136, %s139
    %p148 = scmp.eq.s32.totalorder %s16, 1
    %p149 = por %p147, %p148
    %p150 = scmp.ne.s32.totalorder %s139, %s140
    %p151 = scmp.eq.s32.totalorder %s16, 0
    %p152 = por %p150, %p151
    %p153 = scmp.ne.s32.totalorder %s139, %s140
    %p154 = scmp.eq.s32.totalorder %s17, 1
    %p155 = por %p153, %p154
    %p157 = scmp.ne.s32.totalorder %s140, %s156
    %p158 = scmp.eq.s32.totalorder %s17, 0
    %p159 = por %p157, %p158
    %s160 = ssub.s32 %s18, %s30
    %s161 = ssub.s32 %s19, %s26
    %s162 = sor.u32 %s160, %s161
    %p163 = scmp.eq.s32.totalorder %s162, 0
    %s165 = sadd.s32 %s164, 1
    %s166 = scalar_select %p163, %s164, %s165
    %p169 = pneg %p163
    %p170 = scmp.eq.s32.totalorder %s11, 1
    %p171 = por %p169, %p170
    %p172 = scmp.ne.s32.totalorder %s164, %s167
    %p173 = scmp.eq.s32.totalorder %s11, 0
    %p174 = por %p172, %p173
    %p175 = scmp.ne.s32.totalorder %s164, %s167
    %p176 = scmp.eq.s32.totalorder %s16, 1
    %p177 = por %p175, %p176
    %p178 = scmp.ne.s32.totalorder %s167, %s168
    %p179 = scmp.eq.s32.totalorder %s16, 0
    %p180 = por %p178, %p179
    %p181 = scmp.ne.s32.totalorder %s167, %s168
    %p182 = scmp.eq.s32.totalorder %s17, 1
    %p183 = por %p181, %p182
    %p185 = scmp.ne.s32.totalorder %s168, %s184
    %p186 = scmp.eq.s32.totalorder %s17, 0
    %p187 = por %p185, %p186
    %p188 = scmp.le.s32.totalorder 1, %s11
    %p189 = scmp.lt.s32.totalorder %s11, 3
    %p190 = pnand %p188, %p189
    %p191 = pneg %p190
    // Predicated region
    $region9: #{tpu_custom_call.1} parent=5 // pred_check
      _
    $region10: #{tpu_custom_call.1} parent=5 // pred_check_branch
      %193 = sbr.rel (%p190) target = $region12
    $region11: #{tpu_custom_call.1} parent=5 // pred_region
      %s194 = ssub.s32 %s11, 1
      // Predicated region
      $region13: #{tpu_custom_call.1} parent=11 // pred_check
        %p195 = pneg %p75
      $region14: #{tpu_custom_call.1} parent=11 // pred_check_branch
        %197 = sbr.rel (%p195) target = $region16
      $region15: #{tpu_custom_call.1} parent=11 // pred_region
        %p198 = scmp.lt.s32.totalorder %s21, 0
        %s199 = scalar_select %p198, %s21, 0
        %s200 = smul.addr %s199, 8
        %s201 = scalar_lea.vmem %s1, %s200
      $region16: #{tpu_custom_call.1} parent=11 // pred_fallthru
        _
      // Predicated region
      $region17: #{tpu_custom_call.1} parent=11 // pred_check
        %p202 = pneg %p96
      $region18: #{tpu_custom_call.1} parent=11 // pred_check_branch
        %204 = sbr.rel (%p202) target = $region20
      $region19: #{tpu_custom_call.1} parent=11 // pred_region
        _
      $region20: #{tpu_custom_call.1} parent=11 // pred_fallthru
        _
    $region12: #{tpu_custom_call.1} parent=5 // pred_fallthru
      _
    %p205 = scmp.lt.s32.totalorder %s11, 2
    // Predicated region
    $region21: #{tpu_custom_call.1} parent=5 // pred_check
      %p206 = pneg %p205
    $region22: #{tpu_custom_call.1} parent=5 // pred_check_branch
      %208 = sbr.rel (%p206) target = $region24
    $region23: #{tpu_custom_call.1} parent=5 // pred_region
      // Predicated region
      $region25: #{tpu_custom_call.1} parent=23 // pred_check
        %p209 = pneg %p43
      $region26: #{tpu_custom_call.1} parent=23 // pred_check_branch
        %211 = sbr.rel (%p209) target = $region28
      $region27: #{tpu_custom_call.1} parent=23 // pred_region
        %p212 = scmp.lt.s32.totalorder %s18, 1
        %s213 = scalar_select %p212, %s18, 1
        %s214 = smul.addr %s213, 4
        %s215 = smul.addr %s214, 8
        %s216 = scalar_lea.vmem %s0, %s215
      $region28: #{tpu_custom_call.1} parent=23 // pred_fallthru
        _
      // Predicated region
      $region29: #{tpu_custom_call.1} parent=23 // pred_check
        %p217 = pneg %p118
      $region30: #{tpu_custom_call.1} parent=23 // pred_check_branch
        %219 = sbr.rel (%p217) target = $region32
      $region31: #{tpu_custom_call.1} parent=23 // pred_region
        %p220 = scmp.lt.s32.totalorder %s18, 1
        %s221 = scalar_select %p220, %s18, 1
        %p222 = scmp.lt.s32.totalorder %s19, 0
        %s223 = scalar_select %p222, %s19, 0
        %s224 = smul.addr %s221, 12
        %s225 = sadd.s32 %s223, %s224
        %s226 = smul.addr %s225, 8
        %s227 = scalar_lea.vmem %s3, %s226
      $region32: #{tpu_custom_call.1} parent=23 // pred_fallthru
        _
      // Predicated region
      $region33: #{tpu_custom_call.1} parent=23 // pred_check
        %p228 = pneg %p146
      $region34: #{tpu_custom_call.1} parent=23 // pred_check_branch
        %230 = sbr.rel (%p228) target = $region36
      $region35: #{tpu_custom_call.1} parent=23 // pred_region
        %p231 = scmp.lt.s32.totalorder %s18, 1
        %s232 = scalar_select %p231, %s18, 1
        %p233 = scmp.lt.s32.totalorder %s19, 0
        %s234 = scalar_select %p233, %s19, 0
        %s235 = smul.addr %s232, 6
        %s236 = sadd.s32 %s234, %s235
        %s237 = smul.addr %s236, 8
        %s238 = scalar_lea.vmem %s4, %s237
      $region36: #{tpu_custom_call.1} parent=23 // pred_fallthru
        _
    $region24: #{tpu_custom_call.1} parent=5 // pred_fallthru
      _
    %p239 = scmp.le.s32.totalorder 1, %s11
    %p240 = scmp.lt.s32.totalorder %s11, 3
    %p241 = pnand %p239, %p240
    %p242 = pneg %p241
    // Predicated region
    $region37: #{tpu_custom_call.1} parent=5 // pred_check
      _
    $region38: #{tpu_custom_call.1} parent=5 // pred_check_branch
      %244 = sbr.rel (%p241) target = $region40
    $region39: #{tpu_custom_call.1} parent=5 // pred_region
      %s245 = ssub.s32 %s11, 1
      %p246 = scmp.lt.s32.totalorder %s20, 1
      %s247 = scalar_select %p246, %s20, 1
      %s248 = smul.addr %s247, 4
      %s249 = smul.addr %s248, 8
      %s250 = scalar_lea.vmem %s0, %s249
      %p251 = pneg %p49
      %p252 = pneg %p46
      %p253 = scmp.lt.s32.totalorder %s21, 0
      %s254 = scalar_select %p253, %s21, 0
      %s255 = smul.addr %s254, 8
      %s256 = scalar_lea.vmem %s1, %s255
      %p257 = pneg %p75
      %p258 = pneg %p72
      %p259 = pneg %p96
      %p260 = pneg %p93
      %p261 = scmp.lt.s32.totalorder %s20, 1
      %s262 = scalar_select %p261, %s20, 1
      %p263 = scmp.lt.s32.totalorder %s21, 0
      %s264 = scalar_select %p263, %s21, 0
      %s265 = smul.addr %s262, 12
      %s266 = sadd.s32 %s264, %s265
      %s267 = smul.addr %s266, 8
      %s268 = scalar_lea.vmem %s3, %s267
      %p269 = pneg %p124
      %p270 = pneg %p121
      %p271 = scmp.lt.s32.totalorder %s20, 1
      %s272 = scalar_select %p271, %s20, 1
      %p273 = scmp.lt.s32.totalorder %s21, 0
      %s274 = scalar_select %p273, %s21, 0
      %s275 = smul.addr %s272, 6
      %s276 = sadd.s32 %s274, %s275
      %s277 = smul.addr %s276, 8
      %s278 = scalar_lea.vmem %s4, %s277
      %p279 = pneg %p152
      %p280 = pneg %p149
      %p281 = pneg %p180
      %p282 = pneg %p177
      %p283 = scmp.lt.s32.totalorder %s20, 1
      %s284 = scalar_select %p283, %s20, 1
      %p285 = scmp.lt.s32.totalorder %s21, 0
      %s286 = scalar_select %p285, %s21, 0
      %s287 = smul.addr %s284, 26
      %s288 = sadd.s32 %s286, %s287
      %s289 = smul.addr %s288, 8
      %s290 = scalar_lea.vmem %s5, %s289
      %p291 = scmp.lt.s32.totalorder %s20, 1
      %s292 = scalar_select %p291, %s20, 1
      %s293 = smul.addr %s292, 4
      %s294 = smul.addr %s293, 8
      %s295 = scalar_lea.vmem %s0, %s294
      %p296 = scmp.lt.s32.totalorder %s21, 0
      %s297 = scalar_select %p296, %s21, 0
      %s298 = smul.addr %s297, 8
      %s299 = scalar_lea.vmem %s1, %s298
      %p300 = scmp.lt.s32.totalorder %s20, 1
      %s301 = scalar_select %p300, %s20, 1
      %p302 = scmp.lt.s32.totalorder %s21, 0
      %s303 = scalar_select %p302, %s21, 0
      %s304 = smul.addr %s301, 12
      %s305 = sadd.s32 %s303, %s304
      %s306 = smul.addr %s305, 8
      %s307 = scalar_lea.vmem %s3, %s306
      %p308 = scmp.lt.s32.totalorder %s20, 1
      %s309 = scalar_select %p308, %s20, 1
      %p310 = scmp.lt.s32.totalorder %s21, 0
      %s311 = scalar_select %p310, %s21, 0
      %s312 = smul.addr %s309, 6
      %s313 = sadd.s32 %s311, %s312
      %s314 = smul.addr %s313, 8
      %s315 = scalar_lea.vmem %s4, %s314
      %p316 = scmp.lt.s32.totalorder %s20, 1
      %s317 = scalar_select %p316, %s20, 1
      %p318 = scmp.lt.s32.totalorder %s21, 0
      %s319 = scalar_select %p318, %s21, 0
      %s320 = smul.addr %s317, 26
      %s321 = sadd.s32 %s319, %s320
      %s322 = smul.addr %s321, 8
      %s323 = scalar_lea.vmem %s5, %s322
      %v324 = vld [vmem:[%s307] sm:$0xff]
      %v325 = vld [vmem:[%s307 + $0x8] sm:$0xf]
      %v326 = vld [vmem:[%s307 + $0x10] sm:$0xff]
      %v327 = vld [vmem:[%s307 + $0x18] sm:$0xf]
      %v328 = vld [vmem:[%s307 + $0x20] sm:$0xff]
      %v329 = vld [vmem:[%s307 + $0x28] sm:$0xf]
      %v330 = vld [vmem:[%s307 + $0x30] sm:$0xff]
      %v331 = vld [vmem:[%s307 + $0x38] sm:$0xf]
      %v332 = vld [vmem:[%s307 + $0x40] sm:$0xff]
      %v333 = vld [vmem:[%s307 + $0x48] sm:$0xf]
      %v334 = vld [vmem:[%s307 + $0x50] sm:$0xff]
      %v335 = vld [vmem:[%s307 + $0x58] sm:$0xf]
      %vm336 = vcmask 162816
      %337 = vst.msk [vmem:[%s323] sm:$0xff] %vm336, %v324
      %vm338 = vcmask 158720
      %339 = vst.msk [vmem:[%s323 + $0x8] sm:$0xf] %vm338, %v325
      %340 = vst.msk [vmem:[%s323 + $0x10] sm:$0xff] %vm336, %v326
      %341 = vst.msk [vmem:[%s323 + $0x18] sm:$0xf] %vm338, %v327
      %342 = vst.msk [vmem:[%s323 + $0x20] sm:$0xff] %vm336, %v328
      %343 = vst.msk [vmem:[%s323 + $0x28] sm:$0xf] %vm338, %v329
      %344 = vst.msk [vmem:[%s323 + $0x30] sm:$0xff] %vm336, %v330
      %345 = vst.msk [vmem:[%s323 + $0x38] sm:$0xf] %vm338, %v331
      %346 = vst.msk [vmem:[%s323 + $0x40] sm:$0xff] %vm336, %v332
      %347 = vst.msk [vmem:[%s323 + $0x48] sm:$0xf] %vm338, %v333
      %348 = vst.msk [vmem:[%s323 + $0x50] sm:$0xff] %vm336, %v334
      %349 = vst.msk [vmem:[%s323 + $0x58] sm:$0xf] %vm338, %v335
      %v350 = vld [vmem:[%s315] sm:$0xff]
      %v351 = vld [vmem:[%s315 + $0x8] sm:$0xf]
      %v352 = vld [vmem:[%s315 + $0x10] sm:$0xff]
      %v353 = vld [vmem:[%s315 + $0x18] sm:$0xf]
      %v354 = vld [vmem:[%s315 + $0x20] sm:$0xff]
      %v355 = vld [vmem:[%s315 + $0x28] sm:$0xf]
      %s356 = scalar_lea.vmem %s323, 96
      %357 = vst.msk [vmem:[%s356] sm:$0xff] %vm336, %v350
      %358 = vst.msk [vmem:[%s356 + $0x8] sm:$0xf] %vm338, %v351
      %359 = vst.msk [vmem:[%s356 + $0x10] sm:$0xff] %vm336, %v352
      %360 = vst.msk [vmem:[%s356 + $0x18] sm:$0xf] %vm338, %v353
      %361 = vst.msk [vmem:[%s356 + $0x20] sm:$0xff] %vm336, %v354
      %362 = vst.msk [vmem:[%s356 + $0x28] sm:$0xf] %vm338, %v355
      %v363 = vld [vmem:[%s295] sm:$0xff]
      %v364 = vld [vmem:[%s295 + $0x8] sm:$0xff]
      %v365 = vld [vmem:[%s295 + $0x10] sm:$0xff]
      %v366 = vld [vmem:[%s295 + $0x18] sm:$0xff]
      %v367 = vld [vmem:[%s299] sm:$0xff]
      %vm368 = vcmask 64512
      %v370 = vsel %vm368, %v363, 0
      %v373 = vsel %vm368, %v364, 0
      %v376 = vsel %vm368, %v365, 0
      %v379 = vsel %vm368, %v366, 0
      %381 = vmatpush.msra.mxu0 0.0
      %382 = vmatpush.msra.mxu0 0.0
      %383 = vmatpush.msra.mxu0 0.0
      %384 = vmatpush.msra.mxu0 0.0
      %385 = vmatpush.msra.mxu0 0.0
      %386 = vmatpush.msra.mxu0 0.0
      %387 = vmatpush.msra.mxu0 0.0
      %388 = vmatpush.msra.mxu0 0.0
      %389 = vmatpush.msra.mxu0 0.0
      %390 = vmatpush.msra.mxu0 0.0
      %391 = vmatpush.msra.mxu0 0.0
      %392 = vmatpush.msra.mxu0 0.0
      %393 = vmatpush.msra.mxu0 0.0
      %394 = vmatpush.msra.mxu0 0.0
      %395 = vmatpush.msra.mxu0 0.0
      %396 = vmatpush.msra.mxu0 %v367
      %397 = vmatmul.f32.gmra.mxu0 %v370
      %v398 = vpop.f32.mrf.mxu0
      %v399 = vadd.f32 0.0, %v398
      %400 = vmatmul.f32.gmra.mxu0 %v373
      %v401 = vpop.f32.mrf.mxu0
      %v402 = vadd.f32 0.0, %v401
      %403 = vmatmul.f32.gmra.mxu0 %v376
      %v404 = vpop.f32.mrf.mxu0
      %v405 = vadd.f32 0.0, %v404
      %406 = vmatmul.f32.gmra.mxu0 %v379
      %v407 = vpop.f32.mrf.mxu0
      %v408 = vadd.f32 0.0, %v407
      %409 = vdwg.mxu0
      %v410 = vld [vmem:[%s2] sm:$0xff]
      %v411 = vld [vmem:[%s2 + $0x8] sm:$0xf]
      %v413 = vsel %vm368, %v410, 0
      %v416 = vsel %vm368, %v411, 0
      %418 = vmatpush.msra.mxu0 0.0
      %419 = vmatpush.msra.mxu0 0.0
      %420 = vmatpush.msra.mxu0 0.0
      %421 = vmatpush.msra.mxu0 0.0
      %422 = vmatpush.msra.mxu0 0.0
      %423 = vmatpush.msra.mxu0 0.0
      %424 = vmatpush.msra.mxu0 0.0
      %425 = vmatpush.msra.mxu0 0.0
      %426 = vmatpush.msra.mxu0 0.0
      %427 = vmatpush.msra.mxu0 0.0
      %428 = vmatpush.msra.mxu0 0.0
      %429 = vmatpush.msra.mxu0 0.0
      %430 = vmatpush.msra.mxu0 0.0
      %431 = vmatpush.msra.mxu0 0.0
      %432 = vmatpush.msra.mxu0 0.0
      %433 = vmatpush.msra.mxu0 %v399
      %434 = vmatmul.f32.gmra.mxu0 %v413
      %v435 = vpop.f32.mrf.mxu0
      %v436 = vadd.f32 0.0, %v435
      %437 = vmatmul.f32.gmra.mxu0 %v416
      %v438 = vpop.f32.mrf.mxu0
      %v439 = vadd.f32 0.0, %v438
      %440 = vdwg.mxu0
      %441 = vmatpush.msra.mxu0 0.0
      %442 = vmatpush.msra.mxu0 0.0
      %443 = vmatpush.msra.mxu0 0.0
      %444 = vmatpush.msra.mxu0 0.0
      %445 = vmatpush.msra.mxu0 0.0
      %446 = vmatpush.msra.mxu0 0.0
      %447 = vmatpush.msra.mxu0 0.0
      %448 = vmatpush.msra.mxu0 0.0
      %449 = vmatpush.msra.mxu0 0.0
      %450 = vmatpush.msra.mxu0 0.0
      %451 = vmatpush.msra.mxu0 0.0
      %452 = vmatpush.msra.mxu0 0.0
      %453 = vmatpush.msra.mxu0 0.0
      %454 = vmatpush.msra.mxu0 0.0
      %455 = vmatpush.msra.mxu0 0.0
      %456 = vmatpush.msra.mxu0 %v402
      %457 = vmatmul.f32.gmra.mxu0 %v413
      %v458 = vpop.f32.mrf.mxu0
      %v459 = vadd.f32 0.0, %v458
      %460 = vmatmul.f32.gmra.mxu0 %v416
      %v461 = vpop.f32.mrf.mxu0
      %v462 = vadd.f32 0.0, %v461
      %463 = vdwg.mxu0
      %464 = vmatpush.msra.mxu0 0.0
      %465 = vmatpush.msra.mxu0 0.0
      %466 = vmatpush.msra.mxu0 0.0
      %467 = vmatpush.msra.mxu0 0.0
      %468 = vmatpush.msra.mxu0 0.0
      %469 = vmatpush.msra.mxu0 0.0
      %470 = vmatpush.msra.mxu0 0.0
      %471 = vmatpush.msra.mxu0 0.0
      %472 = vmatpush.msra.mxu0 0.0
      %473 = vmatpush.msra.mxu0 0.0
      %474 = vmatpush.msra.mxu0 0.0
      %475 = vmatpush.msra.mxu0 0.0
      %476 = vmatpush.msra.mxu0 0.0
      %477 = vmatpush.msra.mxu0 0.0
      %478 = vmatpush.msra.mxu0 0.0
      %479 = vmatpush.msra.mxu0 %v405
      %480 = vmatmul.f32.gmra.mxu0 %v413
      %v481 = vpop.f32.mrf.mxu0
      %v482 = vadd.f32 0.0, %v481
      %483 = vmatmul.f32.gmra.mxu0 %v416
      %v484 = vpop.f32.mrf.mxu0
      %v485 = vadd.f32 0.0, %v484
      %486 = vdwg.mxu0
      %487 = vmatpush.msra.mxu0 0.0
      %488 = vmatpush.msra.mxu0 0.0
      %489 = vmatpush.msra.mxu0 0.0
      %490 = vmatpush.msra.mxu0 0.0
      %491 = vmatpush.msra.mxu0 0.0
      %492 = vmatpush.msra.mxu0 0.0
      %493 = vmatpush.msra.mxu0 0.0
      %494 = vmatpush.msra.mxu0 0.0
      %495 = vmatpush.msra.mxu0 0.0
      %496 = vmatpush.msra.mxu0 0.0
      %497 = vmatpush.msra.mxu0 0.0
      %498 = vmatpush.msra.mxu0 0.0
      %499 = vmatpush.msra.mxu0 0.0
      %500 = vmatpush.msra.mxu0 0.0
      %501 = vmatpush.msra.mxu0 0.0
      %502 = vmatpush.msra.mxu0 %v408
      %503 = vmatmul.f32.gmra.mxu0 %v413
      %v504 = vpop.f32.mrf.mxu0
      %v505 = vadd.f32 0.0, %v504
      %506 = vmatmul.f32.gmra.mxu0 %v416
      %v507 = vpop.f32.mrf.mxu0
      %v508 = vadd.f32 0.0, %v507
      %509 = vdwg.mxu0
      %s510 = scalar_lea.vmem %s323, 144
      %511 = vst.msk [vmem:[%s510] sm:$0xff] %vm336, %v436
      %512 = vst.msk [vmem:[%s510 + $0x8] sm:$0xf] %vm338, %v439
      %513 = vst.msk [vmem:[%s510 + $0x10] sm:$0xff] %vm336, %v459
      %514 = vst.msk [vmem:[%s510 + $0x18] sm:$0xf] %vm338, %v462
      %515 = vst.msk [vmem:[%s510 + $0x20] sm:$0xff] %vm336, %v482
      %516 = vst.msk [vmem:[%s510 + $0x28] sm:$0xf] %vm338, %v485
      %517 = vst.msk [vmem:[%s510 + $0x30] sm:$0xff] %vm336, %v505
      %518 = vst.msk [vmem:[%s510 + $0x38] sm:$0xf] %vm338, %v508
      %p519 = scmp.lt.s32.totalorder %s20, 1
      %s520 = scalar_select %p519, %s20, 1
      %p521 = scmp.lt.s32.totalorder %s21, 0
      %s522 = scalar_select %p521, %s21, 0
      %s523 = smul.addr %s520, 26
      %s524 = sadd.s32 %s522, %s523
      %s525 = smul.addr %s524, 8
      %s526 = scalar_lea.vmem %s5, %s525
      // Predicated region
      $region41: #{tpu_custom_call.1} parent=39 // pred_check
        %p527 = pneg %p177
      $region42: #{tpu_custom_call.1} parent=39 // pred_check_branch
        %529 = sbr.rel (%p527) target = $region44
      $region43: #{tpu_custom_call.1} parent=39 // pred_region
        _
      $region44: #{tpu_custom_call.1} parent=39 // pred_fallthru
        _
    $region40: #{tpu_custom_call.1} parent=5 // pred_fallthru
      _
    %p530 = scmp.le.s32.totalorder 2, %s11
    // Predicated region
    $region45: #{tpu_custom_call.1} parent=5 // pred_check
      %p531 = pneg %p530
    $region46: #{tpu_custom_call.1} parent=5 // pred_check_branch
      %533 = sbr.rel (%p531) target = $region48
    $region47: #{tpu_custom_call.1} parent=5 // pred_region
      %s534 = ssub.s32 %s11, 2
      // Predicated region
      $region49: #{tpu_custom_call.1} parent=47 // pred_check
        %p535 = pneg %p183
      $region50: #{tpu_custom_call.1} parent=47 // pred_check_branch
        %537 = sbr.rel (%p535) target = $region52
      $region51: #{tpu_custom_call.1} parent=47 // pred_region
        %p538 = scmp.lt.s32.totalorder %s22, 1
        %s539 = scalar_select %p538, %s22, 1
        %p540 = scmp.lt.s32.totalorder %s23, 0
        %s541 = scalar_select %p540, %s23, 0
        %s542 = smul.addr %s539, 26
        %s543 = sadd.s32 %s541, %s542
        %s544 = smul.addr %s543, 8
        %s545 = scalar_lea.vmem %s5, %s544
      $region52: #{tpu_custom_call.1} parent=47 // pred_fallthru
        _
    $region48: #{tpu_custom_call.1} parent=5 // pred_fallthru
      _
  $region6: #{tpu_custom_call.1} parent=0 // loop_footer
    %s15 = sadd.s32 1, %s11
  $region7: #{tpu_custom_call.1} parent=0 // loop_footer_branch
    %10 = sbr.rel target = $region3
  $region8: #{tpu_custom_call.1} parent=0 // loop_exit
    _

</llo_original>
